<compile_context>
chip_gen: v7x
topology: tpu7x:2x2x1
jax: 0.10.0
libtpu: 0.0.40
codegen_flags: <defaults>
</compile_context>

<pallas_src>
import functools

import jax
import jax.numpy as jnp
from jax.experimental import pallas as pl
from jax.experimental.pallas import tpu as pltpu

LANE = 128
_NEG_BIG = -1e30  # effectively -inf for masked softmax lanes (avoids inf arithmetic)


def _round_up(n, m):
    return ((n + m - 1) // m) * m


def _bf16_vpu_available():
    """bf16 elementwise (VPU/EUP) is native on TPU v6e / v7x; keep f32 math elsewhere."""
    try:
        kind = jax.devices()[0].device_kind.lower()
    except Exception:
        return False
    return ("v6" in kind) or ("v7" in kind)


def _choose_tile(B, block_b):
    """Batch tile TB (multiple of 16) and padded batch Bp (multiple of TB)."""
    b16 = _round_up(max(B, 1), 16)
    TB = min(_round_up(block_b, 16), b16)
    if b16 <= TB and b16 >= 32:
        # Would be a single-step grid: split in two so the "parallel" batch axis can
        # shard across both TensorCores on v7x (harmless on single-TC chips).
        TB = _round_up((b16 + 1) // 2, 16)
    Bp = _round_up(B, TB)
    return TB, Bp


def _mlp_kernel(x_ref, w1_ref, w2_ref, w3_ref, b_ref, o_ref, *, Hp, Dp, d_out,
                compute_dtype, bf16_intermediates):
    # x tile: [TB, D_in] in its HBM dtype; cast to the MXU operand dtype in-kernel.
    x = x_ref[...].astype(compute_dtype)

    # Packed biases (f32): [b1 | b2 | b3] along the lane axis, 128-aligned static slices.
    # b3's padded lanes already hold -1e30 (softmax mask baked in at prep time).
    b1 = b_ref[:, 0:Hp]
    b2 = b_ref[:, Hp:2 * Hp]
    b3 = b_ref[:, 2 * Hp:2 * Hp + Dp]

    if bf16_intermediates:
        # v6e/v7x: native bf16 VPU -> keep intermediates in bf16 (half the vreg/VMEM
        # footprint, no f32->bf16 repack passes). Final logits stay f32 for softmax.
        h = jnp.dot(x, w1_ref[...], preferred_element_type=compute_dtype)
        h = jnp.maximum(h + b1.astype(compute_dtype), 0.0)          # ReLU (clamp(min=0))
        y = jnp.dot(h, w2_ref[...], preferred_element_type=compute_dtype)
        y = y + b2.astype(compute_dtype)
    else:
        # v5e and older: no bf16 VALU -> f32 elementwise math, bf16 only on the MXU.
        h = jnp.dot(x, w1_ref[...], preferred_element_type=jnp.float32) + b1
        h = jnp.maximum(h, 0.0).astype(compute_dtype)
        y = jnp.dot(h, w2_ref[...], preferred_element_type=jnp.float32) + b2
        y = y.astype(compute_dtype)

    # Final layer in f32; padded lanes get -1e30 from b3 and vanish in the softmax.
    z = jnp.dot(y, w3_ref[...], preferred_element_type=jnp.float32) + b3

    # Numerically-stable softmax along dim=-1.
    z = z - jnp.max(z, axis=-1, keepdims=True)
    e = jnp.exp(z)
    inv = pl.reciprocal(jnp.sum(e, axis=-1, keepdims=True), approx=True)
    probs = e * inv

    # Narrow store: only the d_out real lanes go back to HBM.
    o_ref[...] = probs[:, :d_out].astype(o_ref.dtype)


def init_params(key, D_in, H, D_out, dtype=jnp.float32):
    """nn.Linear-style uniform(-1/sqrt(fan_in), 1/sqrt(fan_in)) init.
    Weights stored transposed as [in, out]."""
    ks = jax.random.split(key, 6)

    def lin(kw, kb, fan_in, fan_out):
        bound = 1.0 / jnp.sqrt(fan_in)
        w = jax.random.uniform(kw, (fan_in, fan_out), dtype, -bound, bound)
        b = jax.random.uniform(kb, (1, fan_out), dtype, -bound, bound)
        return w, b

    w1, b1 = lin(ks[0], ks[1], D_in, H)
    w2, b2 = lin(ks[2], ks[3], H, H)
    w3, b3 = lin(ks[4], ks[5], H, D_out)
    return dict(w1=w1, b1=b1, w2=w2, b2=b2, w3=w3, b3=b3)


def prepare_params(params, compute_dtype=jnp.bfloat16, bf16_intermediates=None):
    """One-time prep: pad H/D_out to 128 lanes, cast weights to the MXU operand dtype,
    pack the three biases into a single f32 buffer, and bake the softmax pad mask
    (-1e30) into the padded b3 lanes."""
    w1, b1, w2, b2, w3, b3 = (params["w1"], params["b1"], params["w2"],
                              params["b2"], params["w3"], params["b3"])
    D_in, H = w1.shape
    D_out = w3.shape[1]
    Hp = _round_up(H, LANE)
    Dp = _round_up(D_out, LANE)

    w1p = jnp.pad(w1, ((0, 0), (0, Hp - H))).astype(compute_dtype)
    w2p = jnp.pad(w2, ((0, Hp - H), (0, Hp - H))).astype(compute_dtype)
    w3p = jnp.pad(w3, ((0, Hp - H), (0, Dp - D_out))).astype(compute_dtype)

    b1p = jnp.pad(b1, ((0, 0), (0, Hp - H)))
    b2p = jnp.pad(b2, ((0, 0), (0, Hp - H)))
    # Padded output lanes get -1e30 so they never perturb the softmax max/sum.
    b3p = jnp.pad(b3, ((0, 0), (0, Dp - D_out)), constant_values=_NEG_BIG)
    bias = jnp.concatenate([b1p, b2p, b3p], axis=1).astype(jnp.float32)

    if bf16_intermediates is None:
        bf16_intermediates = _bf16_vpu_available() and compute_dtype == jnp.bfloat16

    return dict(w1=w1p, w2=w2p, w3=w3p, bias=bias,
                D_in=D_in, H=H, D_out=D_out, Hp=Hp, Dp=Dp,
                compute_dtype=compute_dtype,
                bf16_intermediates=bool(bf16_intermediates))


def mlp_agent_forward(x, prepared, *, block_b=2048):
    """x: [B, D_in] float. prepared: output of prepare_params. Returns [B, D_out] f32."""
    B, D_in = x.shape
    assert D_in == prepared["D_in"]
    Hp, Dp, D_out = prepared["Hp"], prepared["Dp"], prepared["D_out"]

    TB, Bp = _choose_tile(B, block_b)
    xin = x if Bp == B else jnp.pad(x, ((0, Bp - B), (0, 0)))

    kernel = functools.partial(
        _mlp_kernel, Hp=Hp, Dp=Dp, d_out=D_out,
        compute_dtype=prepared["compute_dtype"],
        bf16_intermediates=prepared["bf16_intermediates"])

    out = pl.pallas_call(
        kernel,
        out_shape=jax.ShapeDtypeStruct((Bp, D_out), jnp.float32),
        grid=(Bp // TB,),
        in_specs=[
            pl.BlockSpec((TB, D_in), lambda i: (i, 0)),        # streamed batch tile
            pl.BlockSpec((D_in, Hp), lambda i: (0, 0)),        # VMEM-resident weights
            pl.BlockSpec((Hp, Hp), lambda i: (0, 0)),
            pl.BlockSpec((Hp, Dp), lambda i: (0, 0)),
            pl.BlockSpec((1, 2 * Hp + Dp), lambda i: (0, 0)),  # packed biases (1 DMA)
        ],
        # Narrow output block: last dim == full array dim (D_out), so <128 lanes is legal.
        out_specs=pl.BlockSpec((TB, D_out), lambda i: (i, 0)),
        compiler_params=pltpu.CompilerParams(
            dimension_semantics=("parallel",)),                 # megacore on v7x
    )(xin, prepared["w1"], prepared["w2"], prepared["w3"], prepared["bias"])

    return out if Bp == B else out[:B]


def mlp_agent_reference(x, params):
    """Pure-JAX f32 reference of the PyTorch forward."""
    h = jnp.maximum(jnp.dot(x, params["w1"]) + params["b1"], 0.0)
    y = jnp.dot(h, params["w2"]) + params["b2"]
    y = jnp.dot(y, params["w3"]) + params["b3"]
    return jax.nn.softmax(y, axis=-1)


if __name__ == "__main__":
    key = jax.random.PRNGKey(0)
    k_x, k_p, k_x2 = jax.random.split(key, 3)

    D_in, H, D_out = 32, 32, 16
    params = init_params(k_p, D_in, H, D_out)
    prepared = prepare_params(params, compute_dtype=jnp.bfloat16)

    # Batched agent steps: >=2 grid steps with VMEM-resident weights, narrow f32 output.
    B = 256
    x = jax.random.normal(k_x, (B, D_in), dtype=jnp.float32)
    out = jax.block_until_ready(mlp_agent_forward(x, prepared))
    assert out.shape == (B, D_out)

    ref = mlp_agent_reference(x, params)
    # bf16 MXU operands (+ optional bf16 intermediates) vs. f32 reference noise floor.
    assert jnp.allclose(out, ref, atol=3e-2)
    # approx reciprocal -> rows sum to 1 only to ~1e-3/1e-4 relative error.
    assert jnp.allclose(jnp.sum(out, axis=-1), 1.0, atol=1e-2)

    # Small / ragged batch path (rows padded to 16 internally, row-sliced back).
    B2 = 8
    x2 = jax.random.normal(k_x2, (B2, D_in), dtype=jnp.float32)
    out2 = jax.block_until_ready(mlp_agent_forward(x2, prepared))
    ref2 = mlp_agent_reference(x2, params)
    assert out2.shape == (B2, D_out)
    assert jnp.allclose(out2, ref2, atol=3e-2)
    assert jnp.allclose(jnp.sum(out2, axis=-1), 1.0, atol=1e-2)

    print("KERNEL_OK")
</pallas_src>

<mosaic_0001>
module attributes {stable_mosaic.version = 11 : i64} {
  func.func @_mlp_kernel(%arg0: i32, %arg1: memref<128x32xf32, #tpu.memory_space<vmem>>, %arg2: memref<32x128xbf16, #tpu.memory_space<vmem>>, %arg3: memref<128x128xbf16, #tpu.memory_space<vmem>>, %arg4: memref<128x128xbf16, #tpu.memory_space<vmem>>, %arg5: memref<1x384xf32, #tpu.memory_space<vmem>>, %arg6: memref<128x16xf32, #tpu.memory_space<vmem>>) attributes {dimension_semantics = [#tpu.dimension_semantics<parallel>], iteration_bounds = array<i64: 2>, scalar_prefetch = 0 : i64, scratch_operands = 0 : i64, tpu.core_type = #tpu.core_type<tc>, window_params = [{transform_indices = @transform_0, window_bounds = array<i64: 128, 32>}, {pipeline_mode = #tpu.pipeline_mode<synchronous>, transform_indices = @transform_1, window_bounds = array<i64: 32, 128>}, {pipeline_mode = #tpu.pipeline_mode<synchronous>, transform_indices = @transform_2, window_bounds = array<i64: 128, 128>}, {pipeline_mode = #tpu.pipeline_mode<synchronous>, transform_indices = @transform_3, window_bounds = array<i64: 128, 128>}, {pipeline_mode = #tpu.pipeline_mode<synchronous>, transform_indices = @transform_4, window_bounds = array<i64: 1, 384>}, {transform_indices = @transform_5, window_bounds = array<i64: 128, 16>}]} {
    %c0 = arith.constant 0 : index
    %c0_0 = arith.constant 0 : index
    %0 = vector.load %arg1[%c0, %c0_0] : memref<128x32xf32, #tpu.memory_space<vmem>>, vector<128x32xf32>
    %1 = arith.truncf %0 : vector<128x32xf32> to vector<128x32xbf16>
    %c0_1 = arith.constant 0 : index
    %c0_2 = arith.constant 0 : index
    %2 = vector.load %arg5[%c0_1, %c0_2] : memref<1x384xf32, #tpu.memory_space<vmem>>, vector<1x128xf32>
    %c0_3 = arith.constant 0 : index
    %c128 = arith.constant 128 : index
    %3 = vector.load %arg5[%c0_3, %c128] : memref<1x384xf32, #tpu.memory_space<vmem>>, vector<1x128xf32>
    %c0_4 = arith.constant 0 : index
    %c256 = arith.constant 256 : index
    %4 = vector.load %arg5[%c0_4, %c256] : memref<1x384xf32, #tpu.memory_space<vmem>>, vector<1x128xf32>
    %c0_5 = arith.constant 0 : index
    %c0_6 = arith.constant 0 : index
    %5 = vector.load %arg2[%c0_5, %c0_6] : memref<32x128xbf16, #tpu.memory_space<vmem>>, vector<32x128xbf16>
    %cst = arith.constant dense<0.000000e+00> : vector<128x128xf32>
    %6 = tpu.matmul %1, %5, %cst {dimension_numbers = #tpu.dot_dimension_numbers<[1], [0], [0], [1], [0, 0, 1, 1], [], []>} : vector<128x32xbf16>, vector<32x128xbf16>, vector<128x128xf32> -> vector<128x128xf32>
    %7 = vector.broadcast %2 : vector<1x128xf32> to vector<128x128xf32>
    %8 = arith.addf %6, %7 : vector<128x128xf32>
    %cst_7 = arith.constant 0.000000e+00 : f32
    %9 = vector.broadcast %cst_7 : f32 to vector<128x128xf32>
    %10 = arith.maximumf %8, %9 : vector<128x128xf32>
    %11 = arith.truncf %10 : vector<128x128xf32> to vector<128x128xbf16>
    %c0_8 = arith.constant 0 : index
    %c0_9 = arith.constant 0 : index
    %12 = vector.load %arg3[%c0_8, %c0_9] : memref<128x128xbf16, #tpu.memory_space<vmem>>, vector<128x128xbf16>
    %cst_10 = arith.constant dense<0.000000e+00> : vector<128x128xf32>
    %13 = tpu.matmul %11, %12, %cst_10 {dimension_numbers = #tpu.dot_dimension_numbers<[1], [0], [0], [1], [0, 0, 1, 1], [], []>} : vector<128x128xbf16>, vector<128x128xbf16>, vector<128x128xf32> -> vector<128x128xf32>
    %14 = vector.broadcast %3 : vector<1x128xf32> to vector<128x128xf32>
    %15 = arith.addf %13, %14 : vector<128x128xf32>
    %16 = arith.truncf %15 : vector<128x128xf32> to vector<128x128xbf16>
    %c0_11 = arith.constant 0 : index
    %c0_12 = arith.constant 0 : index
    %17 = vector.load %arg4[%c0_11, %c0_12] : memref<128x128xbf16, #tpu.memory_space<vmem>>, vector<128x128xbf16>
    %cst_13 = arith.constant dense<0.000000e+00> : vector<128x128xf32>
    %18 = tpu.matmul %16, %17, %cst_13 {dimension_numbers = #tpu.dot_dimension_numbers<[1], [0], [0], [1], [0, 0, 1, 1], [], []>} : vector<128x128xbf16>, vector<128x128xbf16>, vector<128x128xf32> -> vector<128x128xf32>
    %19 = vector.broadcast %4 : vector<1x128xf32> to vector<128x128xf32>
    %20 = arith.addf %18, %19 : vector<128x128xf32>
    %cst_14 = arith.constant dense<0xFF800000> : vector<128xf32>
    %21 = vector.multi_reduction <maximumf>, %20, %cst_14 [1] : vector<128x128xf32> to vector<128xf32>
    %22 = vector.shape_cast %21 : vector<128xf32> to vector<128x1xf32>
    %23 = vector.broadcast %22 : vector<128x1xf32> to vector<128x128xf32>
    %24 = arith.subf %20, %23 : vector<128x128xf32>
    %25 = math.exp %24 : vector<128x128xf32>
    %cst_15 = arith.constant dense<0.000000e+00> : vector<128xf32>
    %26 = vector.multi_reduction <add>, %25, %cst_15 [1] : vector<128x128xf32> to vector<128xf32>
    %27 = vector.shape_cast %26 : vector<128xf32> to vector<128x1xf32>
    %28 = tpu.reciprocal %27 {approx = true} : vector<128x1xf32> -> vector<128x1xf32>
    %29 = vector.broadcast %28 : vector<128x1xf32> to vector<128x128xf32>
    %30 = arith.mulf %25, %29 : vector<128x128xf32>
    %31 = vector.extract_strided_slice %30 {offsets = [0, 0], sizes = [128, 16], strides = [1, 1]} : vector<128x128xf32> to vector<128x16xf32>
    %c0_16 = arith.constant 0 : index
    %c0_17 = arith.constant 0 : index
    %32 = vector.load %arg6[%c0_16, %c0_17] : memref<128x16xf32, #tpu.memory_space<vmem>>, vector<128x16xf32>
    tpu.vector_store %arg6[%c0_16, %c0_17], %31 {strides = array<i32>} : memref<128x16xf32, #tpu.memory_space<vmem>>, vector<128x16xf32>,
    return
  }
  func.func @transform_0(%arg0: i32) -> (i32, i32) {
    %c0_i32 = arith.constant 0 : i32
    %c0_i32_0 = arith.constant 0 : i32
    return %arg0, %c0_i32 : i32, i32
  }
  func.func @transform_1(%arg0: i32) -> (i32, i32) {
    %c0_i32 = arith.constant 0 : i32
    %c0_i32_0 = arith.constant 0 : i32
    %c0_i32_1 = arith.constant 0 : i32
    return %c0_i32, %c0_i32_0 : i32, i32
  }
  func.func @transform_2(%arg0: i32) -> (i32, i32) {
    %c0_i32 = arith.constant 0 : i32
    %c0_i32_0 = arith.constant 0 : i32
    %c0_i32_1 = arith.constant 0 : i32
    return %c0_i32, %c0_i32_0 : i32, i32
  }
  func.func @transform_3(%arg0: i32) -> (i32, i32) {
    %c0_i32 = arith.constant 0 : i32
    %c0_i32_0 = arith.constant 0 : i32
    %c0_i32_1 = arith.constant 0 : i32
    return %c0_i32, %c0_i32_0 : i32, i32
  }
  func.func @transform_4(%arg0: i32) -> (i32, i32) {
    %c0_i32 = arith.constant 0 : i32
    %c0_i32_0 = arith.constant 0 : i32
    %c0_i32_1 = arith.constant 0 : i32
    return %c0_i32, %c0_i32_0 : i32, i32
  }
  func.func @transform_5(%arg0: i32) -> (i32, i32) {
    %c0_i32 = arith.constant 0 : i32
    %c0_i32_0 = arith.constant 0 : i32
    return %arg0, %c0_i32 : i32, i32
  }
}

</mosaic_0001>

<llo_original>
// kernel: tpu_custom_call.1
$region0: #{tpu_custom_call.1}
  #allocation0 [shape = 'u32[]', space=smem, size = 0x4, offset = 0x4, fixed_abs, tag = 'smem constant byte address 0x4 - core index']
  #allocation1 [shape = 'u32[144,128]{1,0:T(1,128)}', space=vmem, size = 0x12000, scoped, tag = 'internal scratch']
  %s0 = inlined_call_operand.vmem [shape: f32[256,32], index: 0, kind: input, shape index: {}]
  %s1 = inlined_call_operand.vmem [shape: bf16[32,128], index: 1, kind: input, shape index: {}]
  %s2 = inlined_call_operand.vmem [shape: bf16[128,128], index: 2, kind: input, shape index: {}]
  %s3 = inlined_call_operand.vmem [shape: bf16[128,128], index: 3, kind: input, shape index: {}]
  %s4 = inlined_call_operand.vmem [shape: f32[1,384], index: 4, kind: input, shape index: {}]
  %s5 = inlined_call_operand.vmem [shape: f32[256,16], index: 5, kind: output, shape index: {}]
  %s6 = sld [smem:[#allocation0]]
  $region53: #{tpu_custom_call.1} parent=0
    _
  %s8 = ssub.s32 1, %s6
  %s9 = scalar_select 0, %s8, %s6
  loop: start=0, step=1, limit=4
  $region2: #{tpu_custom_call.1} parent=0 // loop_pre_header
    _
  $region3: #{tpu_custom_call.1} parent=0 // loop_header
    %s11 = sphi 0, %s15
    %p12 = scmp.ge.s32.totalorder %s11, 4
    %s21 = sphi 0, %s23
    %s24 = sphi 0, %s21
    %s25 = sphi 0, %s24
    %s41 = sphi 0, %s25
    %s45 = sphi 0, %s45
    %s47 = sphi 0, %s45
    %s48 = sphi 0, %s47
    %s62 = sphi 0, %s48
    %s66 = sphi 0, %s66
    %s68 = sphi 0, %s66
    %s69 = sphi 0, %s68
    %s83 = sphi 0, %s69
    %s87 = sphi 0, %s87
    %s89 = sphi 0, %s87
    %s90 = sphi 0, %s89
    %s104 = sphi 0, %s90
    %s108 = sphi 0, %s108
    %s110 = sphi 0, %s108
    %s111 = sphi 0, %s110
    %s125 = sphi 0, %s111
    %s131 = sphi 0, %s133
    %s134 = sphi 0, %s131
    %s135 = sphi 0, %s134
    %s151 = sphi 0, %s135
  $region4: #{tpu_custom_call.1} parent=0 // loop_header_branch
    %14 = sbr.rel (%p12) target = $region8
  $region5: #{tpu_custom_call.1} parent=0 // loop_body
    %s16 = ssub.s32 %s11, 1
    %s17 = ssub.s32 %s11, 2
    %s18 = sadd.s32 %s11, 1
    %s19 = ssub.s32 %s11, %s18
    %p20 = scmp.eq.s32.totalorder %s19, 0
    %s22 = sadd.s32 %s21, 1
    %s23 = scalar_select %p20, %s21, %s22
    %p26 = pneg %p20
    %p27 = scmp.eq.s32.totalorder %s11, 1
    %p28 = por %p26, %p27
    %p29 = scmp.ne.s32.totalorder %s21, %s24
    %p30 = scmp.eq.s32.totalorder %s11, 0
    %p31 = por %p29, %p30
    %p32 = scmp.ne.s32.totalorder %s21, %s24
    %p33 = scmp.eq.s32.totalorder %s16, 1
    %p34 = por %p32, %p33
    %p35 = scmp.ne.s32.totalorder %s24, %s25
    %p36 = scmp.eq.s32.totalorder %s16, 0
    %p37 = por %p35, %p36
    %p38 = scmp.ne.s32.totalorder %s24, %s25
    %p39 = scmp.eq.s32.totalorder %s17, 1
    %p40 = por %p38, %p39
    %p42 = scmp.ne.s32.totalorder %s25, %s41
    %p43 = scmp.eq.s32.totalorder %s17, 0
    %p44 = por %p42, %p43
    %s46 = sadd.s32 %s45, 1
    %p49 = scmp.eq.s32.totalorder %s11, 1
    %p50 = scmp.ne.s32.totalorder %s45, %s47
    %p51 = scmp.eq.s32.totalorder %s11, 0
    %p52 = por %p50, %p51
    %p53 = scmp.ne.s32.totalorder %s45, %s47
    %p54 = scmp.eq.s32.totalorder %s16, 1
    %p55 = por %p53, %p54
    %p56 = scmp.ne.s32.totalorder %s47, %s48
    %p57 = scmp.eq.s32.totalorder %s16, 0
    %p58 = por %p56, %p57
    %p59 = scmp.ne.s32.totalorder %s47, %s48
    %p60 = scmp.eq.s32.totalorder %s17, 1
    %p61 = por %p59, %p60
    %p63 = scmp.ne.s32.totalorder %s48, %s62
    %p64 = scmp.eq.s32.totalorder %s17, 0
    %p65 = por %p63, %p64
    %s67 = sadd.s32 %s66, 1
    %p70 = scmp.eq.s32.totalorder %s11, 1
    %p71 = scmp.ne.s32.totalorder %s66, %s68
    %p72 = scmp.eq.s32.totalorder %s11, 0
    %p73 = por %p71, %p72
    %p74 = scmp.ne.s32.totalorder %s66, %s68
    %p75 = scmp.eq.s32.totalorder %s16, 1
    %p76 = por %p74, %p75
    %p77 = scmp.ne.s32.totalorder %s68, %s69
    %p78 = scmp.eq.s32.totalorder %s16, 0
    %p79 = por %p77, %p78
    %p80 = scmp.ne.s32.totalorder %s68, %s69
    %p81 = scmp.eq.s32.totalorder %s17, 1
    %p82 = por %p80, %p81
    %p84 = scmp.ne.s32.totalorder %s69, %s83
    %p85 = scmp.eq.s32.totalorder %s17, 0
    %p86 = por %p84, %p85
    %s88 = sadd.s32 %s87, 1
    %p91 = scmp.eq.s32.totalorder %s11, 1
    %p92 = scmp.ne.s32.totalorder %s87, %s89
    %p93 = scmp.eq.s32.totalorder %s11, 0
    %p94 = por %p92, %p93
    %p95 = scmp.ne.s32.totalorder %s87, %s89
    %p96 = scmp.eq.s32.totalorder %s16, 1
    %p97 = por %p95, %p96
    %p98 = scmp.ne.s32.totalorder %s89, %s90
    %p99 = scmp.eq.s32.totalorder %s16, 0
    %p100 = por %p98, %p99
    %p101 = scmp.ne.s32.totalorder %s89, %s90
    %p102 = scmp.eq.s32.totalorder %s17, 1
    %p103 = por %p101, %p102
    %p105 = scmp.ne.s32.totalorder %s90, %s104
    %p106 = scmp.eq.s32.totalorder %s17, 0
    %p107 = por %p105, %p106
    %s109 = sadd.s32 %s108, 1
    %p112 = scmp.eq.s32.totalorder %s11, 1
    %p113 = scmp.ne.s32.totalorder %s108, %s110
    %p114 = scmp.eq.s32.totalorder %s11, 0
    %p115 = por %p113, %p114
    %p116 = scmp.ne.s32.totalorder %s108, %s110
    %p117 = scmp.eq.s32.totalorder %s16, 1
    %p118 = por %p116, %p117
    %p119 = scmp.ne.s32.totalorder %s110, %s111
    %p120 = scmp.eq.s32.totalorder %s16, 0
    %p121 = por %p119, %p120
    %p122 = scmp.ne.s32.totalorder %s110, %s111
    %p123 = scmp.eq.s32.totalorder %s17, 1
    %p124 = por %p122, %p123
    %p126 = scmp.ne.s32.totalorder %s111, %s125
    %p127 = scmp.eq.s32.totalorder %s17, 0
    %p128 = por %p126, %p127
    %s129 = ssub.s32 %s11, %s18
    %p130 = scmp.eq.s32.totalorder %s129, 0
    %s132 = sadd.s32 %s131, 1
    %s133 = scalar_select %p130, %s131, %s132
    %p136 = pneg %p130
    %p137 = scmp.eq.s32.totalorder %s11, 1
    %p138 = por %p136, %p137
    %p139 = scmp.ne.s32.totalorder %s131, %s134
    %p140 = scmp.eq.s32.totalorder %s11, 0
    %p141 = por %p139, %p140
    %p142 = scmp.ne.s32.totalorder %s131, %s134
    %p143 = scmp.eq.s32.totalorder %s16, 1
    %p144 = por %p142, %p143
    %p145 = scmp.ne.s32.totalorder %s134, %s135
    %p146 = scmp.eq.s32.totalorder %s16, 0
    %p147 = por %p145, %p146
    %p148 = scmp.ne.s32.totalorder %s134, %s135
    %p149 = scmp.eq.s32.totalorder %s17, 1
    %p150 = por %p148, %p149
    %p152 = scmp.ne.s32.totalorder %s135, %s151
    %p153 = scmp.eq.s32.totalorder %s17, 0
    %p154 = por %p152, %p153
    %p155 = scmp.le.s32.totalorder 1, %s11
    %p156 = scmp.lt.s32.totalorder %s11, 3
    %p157 = pnand %p155, %p156
    %p158 = pneg %p157
    // Predicated region
    $region9: #{tpu_custom_call.1} parent=5 // pred_check
      _
    $region10: #{tpu_custom_call.1} parent=5 // pred_check_branch
      %160 = sbr.rel (%p157) target = $region12
    $region11: #{tpu_custom_call.1} parent=5 // pred_region
      %s161 = ssub.s32 %s11, 1
      // Predicated region
      $region13: #{tpu_custom_call.1} parent=11 // pred_check
        %p162 = pneg %p58
      $region14: #{tpu_custom_call.1} parent=11 // pred_check_branch
        %164 = sbr.rel (%p162) target = $region16
      $region15: #{tpu_custom_call.1} parent=11 // pred_region
        _
      $region16: #{tpu_custom_call.1} parent=11 // pred_fallthru
        _
      // Predicated region
      $region17: #{tpu_custom_call.1} parent=11 // pred_check
        %p165 = pneg %p79
      $region18: #{tpu_custom_call.1} parent=11 // pred_check_branch
        %167 = sbr.rel (%p165) target = $region20
      $region19: #{tpu_custom_call.1} parent=11 // pred_region
        _
      $region20: #{tpu_custom_call.1} parent=11 // pred_fallthru
        _
      // Predicated region
      $region21: #{tpu_custom_call.1} parent=11 // pred_check
        %p168 = pneg %p100
      $region22: #{tpu_custom_call.1} parent=11 // pred_check_branch
        %170 = sbr.rel (%p168) target = $region24
      $region23: #{tpu_custom_call.1} parent=11 // pred_region
        _
      $region24: #{tpu_custom_call.1} parent=11 // pred_fallthru
        _
      // Predicated region
      $region25: #{tpu_custom_call.1} parent=11 // pred_check
        %p171 = pneg %p121
      $region26: #{tpu_custom_call.1} parent=11 // pred_check_branch
        %173 = sbr.rel (%p171) target = $region28
      $region27: #{tpu_custom_call.1} parent=11 // pred_region
        _
      $region28: #{tpu_custom_call.1} parent=11 // pred_fallthru
        _
    $region12: #{tpu_custom_call.1} parent=5 // pred_fallthru
      _
    %p174 = scmp.lt.s32.totalorder %s11, 2
    // Predicated region
    $region29: #{tpu_custom_call.1} parent=5 // pred_check
      %p175 = pneg %p174
    $region30: #{tpu_custom_call.1} parent=5 // pred_check_branch
      %177 = sbr.rel (%p175) target = $region32
    $region31: #{tpu_custom_call.1} parent=5 // pred_region
      // Predicated region
      $region33: #{tpu_custom_call.1} parent=31 // pred_check
        %p178 = pneg %p31
      $region34: #{tpu_custom_call.1} parent=31 // pred_check_branch
        %180 = sbr.rel (%p178) target = $region36
      $region35: #{tpu_custom_call.1} parent=31 // pred_region
        %s181 = smul.u32 16, %s11
        %p182 = scmp.lt.s32.totalorder %s181, 31
        %s183 = scalar_select %p182, %s181, 31
        %s184 = smul.addr %s183, 8
        %s185 = scalar_lea.vmem %s0, %s184
        %s186 = smul.u32 16, %s11
      $region36: #{tpu_custom_call.1} parent=31 // pred_fallthru
        _
    $region32: #{tpu_custom_call.1} parent=5 // pred_fallthru
      _
    %p187 = scmp.le.s32.totalorder 1, %s11
    %p188 = scmp.lt.s32.totalorder %s11, 3
    %p189 = pnand %p187, %p188
    %p190 = pneg %p189
    // Predicated region
    $region37: #{tpu_custom_call.1} parent=5 // pred_check
      _
    $region38: #{tpu_custom_call.1} parent=5 // pred_check_branch
      %192 = sbr.rel (%p189) target = $region40
    $region39: #{tpu_custom_call.1} parent=5 // pred_region
      %s193 = ssub.s32 %s11, 1
      %s194 = smul.u32 16, %s16
      %p195 = scmp.lt.s32.totalorder %s194, 31
      %s196 = scalar_select %p195, %s194, 31
      %s197 = smul.addr %s196, 8
      %s198 = scalar_lea.vmem %s0, %s197
      %p199 = pneg %p37
      %p200 = pneg %p34
      %p201 = pneg %p58
      %p202 = pneg %p55
      %p203 = pneg %p79
      %p204 = pneg %p76
      %p205 = pneg %p100
      %p206 = pneg %p97
      %p207 = pneg %p121
      %p208 = pneg %p118
      %p209 = pneg %p147
      %p210 = pneg %p144
      %s211 = smul.u32 16, %s16
      %p212 = scmp.lt.s32.totalorder %s211, 31
      %s213 = scalar_select %p212, %s211, 31
      %s214 = smul.addr %s213, 8
      %s215 = scalar_lea.vmem %s5, %s214
      %s216 = smul.u32 16, %s16
      %p217 = scmp.lt.s32.totalorder %s216, 31
      %s218 = scalar_select %p217, %s216, 31
      %s219 = smul.addr %s218, 8
      %s220 = scalar_lea.vmem %s0, %s219
      %s221 = smul.u32 16, %s16
      %s222 = smul.u32 16, %s16
      %p223 = scmp.lt.s32.totalorder %s222, 31
      %s224 = scalar_select %p223, %s222, 31
      %s225 = smul.addr %s224, 8
      %s226 = scalar_lea.vmem %s5, %s225
      %s227 = smul.u32 16, %s16
      %v229 = vld [vmem:[%s220] sm:$0xff]
      %v230 = vld [vmem:[%s220 + $0x8] sm:$0xff]
      %v231 = vld [vmem:[%s220 + $0x10] sm:$0xff]
      %v232 = vld [vmem:[%s220 + $0x18] sm:$0xff]
      %v233 = vld [vmem:[%s220 + $0x20] sm:$0xff]
      %v234 = vld [vmem:[%s220 + $0x28] sm:$0xff]
      %v235 = vld [vmem:[%s220 + $0x30] sm:$0xff]
      %v236 = vld [vmem:[%s220 + $0x38] sm:$0xff]
      %v237 = vld [vmem:[%s220 + $0x40] sm:$0xff]
      %v238 = vld [vmem:[%s220 + $0x48] sm:$0xff]
      %v239 = vld [vmem:[%s220 + $0x50] sm:$0xff]
      %v240 = vld [vmem:[%s220 + $0x58] sm:$0xff]
      %v241 = vld [vmem:[%s220 + $0x60] sm:$0xff]
      %v242 = vld [vmem:[%s220 + $0x68] sm:$0xff]
      %v243 = vld [vmem:[%s220 + $0x70] sm:$0xff]
      %v244 = vld [vmem:[%s220 + $0x78] sm:$0xff]
      %v245 = vpack.c.bf16 %v230, %v229
      %v246 = vpack.c.bf16 %v232, %v231
      %v247 = vpack.c.bf16 %v234, %v233
      %v248 = vpack.c.bf16 %v236, %v235
      %v249 = vpack.c.bf16 %v238, %v237
      %v250 = vpack.c.bf16 %v240, %v239
      %v251 = vpack.c.bf16 %v242, %v241
      %v252 = vpack.c.bf16 %v244, %v243
      %v253 = vld [vmem:[%s4] sm:$0x1]
      %v254 = vld [vmem:[%s4 + $0x1] sm:$0x1]
      %v255 = vld [vmem:[%s4 + $0x2] sm:$0x1]
      %v256 = vld [vmem:[%s1] sm:$0xf]
      %v257 = vld [vmem:[%s1 + $0x4] sm:$0xf]
      %v258 = vld [vmem:[%s1 + $0x8] sm:$0xf]
      %v259 = vld [vmem:[%s1 + $0xc] sm:$0xf]
      %v261 = vlaneseq
      %v262 = vshrl.u32 %v261, 7
      %v263 = vsub.s32 0, %v262
      %v264 = vrot.slane %v253, %v263
      %v270 = vunpack.c.l.b16 %v256
      %v271 = vunpack.c.l.b16 %v257
      %v272 = vunpack.c.l.b16 %v258
      %v273 = vunpack.c.l.b16 %v259
      %v274 = vpack.c.b16 %v271, %v270
      %v275 = vpack.c.b16 %v273, %v272
      %vm278 = vcmask 261120
      %v280 = vsel %vm278, %v245, 0
      %v283 = vsel %vm278, %v246, 0
      %v286 = vsel %vm278, %v247, 0
      %v289 = vsel %vm278, %v248, 0
      %v292 = vsel %vm278, %v249, 0
      %v295 = vsel %vm278, %v250, 0
      %v298 = vsel %vm278, %v251, 0
      %v301 = vsel %vm278, %v252, 0
      %303 = vmatprep.subr.bf16.mxu0 0
      %304 = vmatpush1.bf16.msra.mxu0 %v274
      %305 = vmatprep.subr.bf16.mxu0 0
      %306 = vmatpush1.bf16.msra.mxu0 %v275
      %307 = vmatprep.subr.bf16.mxu0 0
      %308 = vmatpush1.bf16.msra.mxu0 0
      %309 = vmatprep.subr.bf16.mxu0 0
      %310 = vmatpush1.bf16.msra.mxu0 0
      %311 = vmatprep.subr.bf16.mxu0 0
      %312 = vmatpush1.bf16.msra.mxu0 0
      %313 = vmatprep.subr.bf16.mxu0 0
      %314 = vmatpush1.bf16.msra.mxu0 0
      %315 = vmatprep.subr.bf16.mxu0 0
      %316 = vmatpush1.bf16.msra.mxu0 0
      %317 = vmatprep.subr.bf16.mxu0 0
      %318 = vmatpush1.bf16.msra.mxu0 0
      %319 = vmatprep.subr.bf16.mxu0 0
      %320 = vmatpush1.bf16.msra.mxu0 0
      %321 = vmatprep.subr.bf16.mxu0 0
      %322 = vmatpush1.bf16.msra.mxu0 0
      %323 = vmatprep.subr.bf16.mxu0 0
      %324 = vmatpush1.bf16.msra.mxu0 0
      %325 = vmatprep.subr.bf16.mxu0 0
      %326 = vmatpush1.bf16.msra.mxu0 0
      %327 = vmatprep.subr.bf16.mxu0 0
      %328 = vmatpush1.bf16.msra.mxu0 0
      %329 = vmatprep.subr.bf16.mxu0 0
      %330 = vmatpush1.bf16.msra.mxu0 0
      %331 = vmatprep.subr.bf16.mxu0 0
      %332 = vmatpush1.bf16.msra.mxu0 0
      %333 = vmatprep.subr.bf16.mxu0 0
      %334 = vmatpush1.bf16.msra.mxu0 0
      %335 = vmatprep.mubr.bf16.mxu0 0
      %336 = vmatmul.mubr.bf16.gmra.mrb[0].mxu0 %v280
      %v337 = vpop.f32.mrb[0].mxu0
      %v338 = vadd.f32 %v264, %v337
      %v339 = vpop.f32.mrb[0].mxu0
      %v340 = vpop.f32.mrb[0].mxu0
      %v341 = vadd.f32 %v264, %v340
      %v342 = vpop.f32.mrb[0].mxu0
      %343 = vmatprep.mubr.bf16.mxu0 0
      %344 = vmatmul.mubr.bf16.gmra.mrb[0].mxu0 %v283
      %v345 = vpop.f32.mrb[0].mxu0
      %v346 = vadd.f32 %v264, %v345
      %v347 = vpop.f32.mrb[0].mxu0
      %v348 = vpop.f32.mrb[0].mxu0
      %v349 = vadd.f32 %v264, %v348
      %v350 = vpop.f32.mrb[0].mxu0
      %351 = vmatprep.mubr.bf16.mxu0 0
      %352 = vmatmul.mubr.bf16.gmra.mrb[0].mxu0 %v286
      %v353 = vpop.f32.mrb[0].mxu0
      %v354 = vadd.f32 %v264, %v353
      %v355 = vpop.f32.mrb[0].mxu0
      %v356 = vpop.f32.mrb[0].mxu0
      %v357 = vadd.f32 %v264, %v356
      %v358 = vpop.f32.mrb[0].mxu0
      %359 = vmatprep.mubr.bf16.mxu0 0
      %360 = vmatmul.mubr.bf16.gmra.mrb[0].mxu0 %v289
      %v361 = vpop.f32.mrb[0].mxu0
      %v362 = vadd.f32 %v264, %v361
      %v363 = vpop.f32.mrb[0].mxu0
      %v364 = vpop.f32.mrb[0].mxu0
      %v365 = vadd.f32 %v264, %v364
      %v366 = vpop.f32.mrb[0].mxu0
      %367 = vmatprep.mubr.bf16.mxu0 0
      %368 = vmatmul.mubr.bf16.gmra.mrb[0].mxu0 %v292
      %v369 = vpop.f32.mrb[0].mxu0
      %v370 = vadd.f32 %v264, %v369
      %v371 = vpop.f32.mrb[0].mxu0
      %v372 = vpop.f32.mrb[0].mxu0
      %v373 = vadd.f32 %v264, %v372
      %v374 = vpop.f32.mrb[0].mxu0
      %375 = vmatprep.mubr.bf16.mxu0 0
      %376 = vmatmul.mubr.bf16.gmra.mrb[0].mxu0 %v295
      %v377 = vpop.f32.mrb[0].mxu0
      %v378 = vadd.f32 %v264, %v377
      %v379 = vpop.f32.mrb[0].mxu0
      %v380 = vpop.f32.mrb[0].mxu0
      %v381 = vadd.f32 %v264, %v380
      %v382 = vpop.f32.mrb[0].mxu0
      %383 = vmatprep.mubr.bf16.mxu0 0
      %384 = vmatmul.mubr.bf16.gmra.mrb[0].mxu0 %v298
      %v385 = vpop.f32.mrb[0].mxu0
      %v386 = vadd.f32 %v264, %v385
      %v387 = vpop.f32.mrb[0].mxu0
      %v388 = vpop.f32.mrb[0].mxu0
      %v389 = vadd.f32 %v264, %v388
      %v390 = vpop.f32.mrb[0].mxu0
      %391 = vmatprep.mubr.bf16.mxu0 0
      %392 = vmatmul.mubr.bf16.gmra.mrb[0].mxu0 %v301
      %v393 = vpop.f32.mrb[0].mxu0
      %v394 = vadd.f32 %v264, %v393
      %v395 = vpop.f32.mrb[0].mxu0
      %v396 = vpop.f32.mrb[0].mxu0
      %v397 = vadd.f32 %v264, %v396
      %v398 = vpop.f32.mrb[0].mxu0
      %399 = vdwg.mxu0
      %v400 = vmax.f32 %v338, 0.0
      %v401 = vmax.f32 %v341, 0.0
      %v402 = vmax.f32 %v346, 0.0
      %v403 = vmax.f32 %v349, 0.0
      %v404 = vmax.f32 %v354, 0.0
      %v405 = vmax.f32 %v357, 0.0
      %v406 = vmax.f32 %v362, 0.0
      %v407 = vmax.f32 %v365, 0.0
      %v408 = vmax.f32 %v370, 0.0
      %v409 = vmax.f32 %v373, 0.0
      %v410 = vmax.f32 %v378, 0.0
      %v411 = vmax.f32 %v381, 0.0
      %v412 = vmax.f32 %v386, 0.0
      %v413 = vmax.f32 %v389, 0.0
      %v414 = vmax.f32 %v394, 0.0
      %v415 = vmax.f32 %v397, 0.0
      %v416 = vpack.c.bf16 %v401, %v400
      %v417 = vpack.c.bf16 %v403, %v402
      %v418 = vpack.c.bf16 %v405, %v404
      %v419 = vpack.c.bf16 %v407, %v406
      %v420 = vpack.c.bf16 %v409, %v408
      %v421 = vpack.c.bf16 %v411, %v410
      %v422 = vpack.c.bf16 %v413, %v412
      %v423 = vpack.c.bf16 %v415, %v414
      %v424 = vld [vmem:[%s2] sm:$0xf]
      %v425 = vld [vmem:[%s2 + $0x4] sm:$0xf]
      %v426 = vld [vmem:[%s2 + $0x8] sm:$0xf]
      %v427 = vld [vmem:[%s2 + $0xc] sm:$0xf]
      %v428 = vld [vmem:[%s2 + $0x10] sm:$0xf]
      %v429 = vld [vmem:[%s2 + $0x14] sm:$0xf]
      %v430 = vld [vmem:[%s2 + $0x18] sm:$0xf]
      %v431 = vld [vmem:[%s2 + $0x1c] sm:$0xf]
      %v432 = vld [vmem:[%s2 + $0x20] sm:$0xf]
      %v433 = vld [vmem:[%s2 + $0x24] sm:$0xf]
      %v434 = vld [vmem:[%s2 + $0x28] sm:$0xf]
      %v435 = vld [vmem:[%s2 + $0x2c] sm:$0xf]
      %v436 = vld [vmem:[%s2 + $0x30] sm:$0xf]
      %v437 = vld [vmem:[%s2 + $0x34] sm:$0xf]
      %v438 = vld [vmem:[%s2 + $0x38] sm:$0xf]
      %v439 = vld [vmem:[%s2 + $0x3c] sm:$0xf]
      %v441 = vlaneseq
      %v442 = vshrl.u32 %v441, 7
      %v443 = vsub.s32 0, %v442
      %v444 = vrot.slane %v254, %v443
      %v462 = vunpack.c.l.b16 %v424
      %v463 = vunpack.c.l.b16 %v425
      %v464 = vunpack.c.l.b16 %v426
      %v465 = vunpack.c.l.b16 %v427
      %v466 = vunpack.c.l.b16 %v428
      %v467 = vunpack.c.l.b16 %v429
      %v468 = vunpack.c.l.b16 %v430
      %v469 = vunpack.c.l.b16 %v431
      %v470 = vunpack.c.l.b16 %v432
      %v471 = vunpack.c.l.b16 %v433
      %v472 = vunpack.c.l.b16 %v434
      %v473 = vunpack.c.l.b16 %v435
      %v474 = vunpack.c.l.b16 %v436
      %v475 = vunpack.c.l.b16 %v437
      %v476 = vunpack.c.l.b16 %v438
      %v477 = vunpack.c.l.b16 %v439
      %v478 = vpack.c.b16 %v463, %v462
      %v479 = vpack.c.b16 %v465, %v464
      %v480 = vpack.c.b16 %v467, %v466
      %v481 = vpack.c.b16 %v469, %v468
      %v482 = vpack.c.b16 %v471, %v470
      %v483 = vpack.c.b16 %v473, %v472
      %v484 = vpack.c.b16 %v475, %v474
      %v485 = vpack.c.b16 %v477, %v476
      %494 = vmatprep.subr.bf16.mxu0 0
      %495 = vmatpush1.bf16.msra.mxu0 %v478
      %496 = vmatprep.subr.bf16.mxu0 0
      %497 = vmatpush1.bf16.msra.mxu0 %v479
      %498 = vmatprep.subr.bf16.mxu0 0
      %499 = vmatpush1.bf16.msra.mxu0 %v480
      %500 = vmatprep.subr.bf16.mxu0 0
      %501 = vmatpush1.bf16.msra.mxu0 %v481
      %502 = vmatprep.subr.bf16.mxu0 0
      %503 = vmatpush1.bf16.msra.mxu0 %v482
      %504 = vmatprep.subr.bf16.mxu0 0
      %505 = vmatpush1.bf16.msra.mxu0 %v483
      %506 = vmatprep.subr.bf16.mxu0 0
      %507 = vmatpush1.bf16.msra.mxu0 %v484
      %508 = vmatprep.subr.bf16.mxu0 0
      %509 = vmatpush1.bf16.msra.mxu0 %v485
      %510 = vmatprep.subr.bf16.mxu0 0
      %511 = vmatpush1.bf16.msra.mxu0 0
      %512 = vmatprep.subr.bf16.mxu0 0
      %513 = vmatpush1.bf16.msra.mxu0 0
      %514 = vmatprep.subr.bf16.mxu0 0
      %515 = vmatpush1.bf16.msra.mxu0 0
      %516 = vmatprep.subr.bf16.mxu0 0
      %517 = vmatpush1.bf16.msra.mxu0 0
      %518 = vmatprep.subr.bf16.mxu0 0
      %519 = vmatpush1.bf16.msra.mxu0 0
      %520 = vmatprep.subr.bf16.mxu0 0
      %521 = vmatpush1.bf16.msra.mxu0 0
      %522 = vmatprep.subr.bf16.mxu0 0
      %523 = vmatpush1.bf16.msra.mxu0 0
      %524 = vmatprep.subr.bf16.mxu0 0
      %525 = vmatpush1.bf16.msra.mxu0 0
      %526 = vmatprep.mubr.bf16.mxu0 0
      %527 = vmatmul.mubr.bf16.gmra.mrb[0].mxu0 %v416
      %v528 = vpop.f32.mrb[0].mxu0
      %v529 = vadd.f32 %v444, %v528
      %v530 = vpop.f32.mrb[0].mxu0
      %v531 = vpop.f32.mrb[0].mxu0
      %v532 = vadd.f32 %v444, %v531
      %v533 = vpop.f32.mrb[0].mxu0
      %534 = vmatprep.mubr.bf16.mxu0 0
      %535 = vmatmul.mubr.bf16.gmra.mrb[0].mxu0 %v417
      %v536 = vpop.f32.mrb[0].mxu0
      %v537 = vadd.f32 %v444, %v536
      %v538 = vpop.f32.mrb[0].mxu0
      %v539 = vpop.f32.mrb[0].mxu0
      %v540 = vadd.f32 %v444, %v539
      %v541 = vpop.f32.mrb[0].mxu0
      %542 = vmatprep.mubr.bf16.mxu0 0
      %543 = vmatmul.mubr.bf16.gmra.mrb[0].mxu0 %v418
      %v544 = vpop.f32.mrb[0].mxu0
      %v545 = vadd.f32 %v444, %v544
      %v546 = vpop.f32.mrb[0].mxu0
      %v547 = vpop.f32.mrb[0].mxu0
      %v548 = vadd.f32 %v444, %v547
      %v549 = vpop.f32.mrb[0].mxu0
      %550 = vmatprep.mubr.bf16.mxu0 0
      %551 = vmatmul.mubr.bf16.gmra.mrb[0].mxu0 %v419
      %v552 = vpop.f32.mrb[0].mxu0
      %v553 = vadd.f32 %v444, %v552
      %v554 = vpop.f32.mrb[0].mxu0
      %v555 = vpop.f32.mrb[0].mxu0
      %v556 = vadd.f32 %v444, %v555
      %v557 = vpop.f32.mrb[0].mxu0
      %558 = vmatprep.mubr.bf16.mxu0 0
      %559 = vmatmul.mubr.bf16.gmra.mrb[0].mxu0 %v420
      %v560 = vpop.f32.mrb[0].mxu0
      %v561 = vadd.f32 %v444, %v560
      %v562 = vpop.f32.mrb[0].mxu0
      %v563 = vpop.f32.mrb[0].mxu0
      %v564 = vadd.f32 %v444, %v563
      %v565 = vpop.f32.mrb[0].mxu0
      %566 = vmatprep.mubr.bf16.mxu0 0
      %567 = vmatmul.mubr.bf16.gmra.mrb[0].mxu0 %v421
      %v568 = vpop.f32.mrb[0].mxu0
      %v569 = vadd.f32 %v444, %v568
      %v570 = vpop.f32.mrb[0].mxu0
      %v571 = vpop.f32.mrb[0].mxu0
      %v572 = vadd.f32 %v444, %v571
      %v573 = vpop.f32.mrb[0].mxu0
      %574 = vmatprep.mubr.bf16.mxu0 0
      %575 = vmatmul.mubr.bf16.gmra.mrb[0].mxu0 %v422
      %v576 = vpop.f32.mrb[0].mxu0
      %v577 = vadd.f32 %v444, %v576
      %v578 = vpop.f32.mrb[0].mxu0
      %v579 = vpop.f32.mrb[0].mxu0
      %v580 = vadd.f32 %v444, %v579
      %v581 = vpop.f32.mrb[0].mxu0
      %582 = vmatprep.mubr.bf16.mxu0 0
      %583 = vmatmul.mubr.bf16.gmra.mrb[0].mxu0 %v423
      %v584 = vpop.f32.mrb[0].mxu0
      %v585 = vadd.f32 %v444, %v584
      %v586 = vpop.f32.mrb[0].mxu0
      %v587 = vpop.f32.mrb[0].mxu0
      %v588 = vadd.f32 %v444, %v587
      %v589 = vpop.f32.mrb[0].mxu0
      %590 = vdwg.mxu0
      %v591 = vpack.c.bf16 %v532, %v529
      %v592 = vpack.c.bf16 %v540, %v537
      %v593 = vpack.c.bf16 %v548, %v545
      %v594 = vpack.c.bf16 %v556, %v553
      %v595 = vpack.c.bf16 %v564, %v561
      %v596 = vpack.c.bf16 %v572, %v569
      %v597 = vpack.c.bf16 %v580, %v577
      %v598 = vpack.c.bf16 %v588, %v585
      %v599 = vld [vmem:[%s3] sm:$0xf]
      %v600 = vld [vmem:[%s3 + $0x4] sm:$0xf]
      %v601 = vld [vmem:[%s3 + $0x8] sm:$0xf]
      %v602 = vld [vmem:[%s3 + $0xc] sm:$0xf]
      %v603 = vld [vmem:[%s3 + $0x10] sm:$0xf]
      %v604 = vld [vmem:[%s3 + $0x14] sm:$0xf]
      %v605 = vld [vmem:[%s3 + $0x18] sm:$0xf]
      %v606 = vld [vmem:[%s3 + $0x1c] sm:$0xf]
      %v607 = vld [vmem:[%s3 + $0x20] sm:$0xf]
      %v608 = vld [vmem:[%s3 + $0x24] sm:$0xf]
      %v609 = vld [vmem:[%s3 + $0x28] sm:$0xf]
      %v610 = vld [vmem:[%s3 + $0x2c] sm:$0xf]
      %v611 = vld [vmem:[%s3 + $0x30] sm:$0xf]
      %v612 = vld [vmem:[%s3 + $0x34] sm:$0xf]
      %v613 = vld [vmem:[%s3 + $0x38] sm:$0xf]
      %v614 = vld [vmem:[%s3 + $0x3c] sm:$0xf]
      %v616 = vlaneseq
      %v617 = vshrl.u32 %v616, 7
      %v618 = vsub.s32 0, %v617
      %v619 = vrot.slane %v255, %v618
      %v637 = vunpack.c.l.b16 %v599
      %v638 = vunpack.c.l.b16 %v600
      %v639 = vunpack.c.l.b16 %v601
      %v640 = vunpack.c.l.b16 %v602
      %v641 = vunpack.c.l.b16 %v603
      %v642 = vunpack.c.l.b16 %v604
      %v643 = vunpack.c.l.b16 %v605
      %v644 = vunpack.c.l.b16 %v606
      %v645 = vunpack.c.l.b16 %v607
      %v646 = vunpack.c.l.b16 %v608
      %v647 = vunpack.c.l.b16 %v609
      %v648 = vunpack.c.l.b16 %v610
      %v649 = vunpack.c.l.b16 %v611
      %v650 = vunpack.c.l.b16 %v612
      %v651 = vunpack.c.l.b16 %v613
      %v652 = vunpack.c.l.b16 %v614
      %v653 = vpack.c.b16 %v638, %v637
      %v654 = vpack.c.b16 %v640, %v639
      %v655 = vpack.c.b16 %v642, %v641
      %v656 = vpack.c.b16 %v644, %v643
      %v657 = vpack.c.b16 %v646, %v645
      %v658 = vpack.c.b16 %v648, %v647
      %v659 = vpack.c.b16 %v650, %v649
      %v660 = vpack.c.b16 %v652, %v651
      %669 = vmatprep.subr.bf16.mxu0 0
      %670 = vmatpush1.bf16.msra.mxu0 %v653
      %671 = vmatprep.subr.bf16.mxu0 0
      %672 = vmatpush1.bf16.msra.mxu0 %v654
      %673 = vmatprep.subr.bf16.mxu0 0
      %674 = vmatpush1.bf16.msra.mxu0 %v655
      %675 = vmatprep.subr.bf16.mxu0 0
      %676 = vmatpush1.bf16.msra.mxu0 %v656
      %677 = vmatprep.subr.bf16.mxu0 0
      %678 = vmatpush1.bf16.msra.mxu0 %v657
      %679 = vmatprep.subr.bf16.mxu0 0
      %680 = vmatpush1.bf16.msra.mxu0 %v658
      %681 = vmatprep.subr.bf16.mxu0 0
      %682 = vmatpush1.bf16.msra.mxu0 %v659
      %683 = vmatprep.subr.bf16.mxu0 0
      %684 = vmatpush1.bf16.msra.mxu0 %v660
      %685 = vmatprep.subr.bf16.mxu0 0
      %686 = vmatpush1.bf16.msra.mxu0 0
      %687 = vmatprep.subr.bf16.mxu0 0
      %688 = vmatpush1.bf16.msra.mxu0 0
      %689 = vmatprep.subr.bf16.mxu0 0
      %690 = vmatpush1.bf16.msra.mxu0 0
      %691 = vmatprep.subr.bf16.mxu0 0
      %692 = vmatpush1.bf16.msra.mxu0 0
      %693 = vmatprep.subr.bf16.mxu0 0
      %694 = vmatpush1.bf16.msra.mxu0 0
      %695 = vmatprep.subr.bf16.mxu0 0
      %696 = vmatpush1.bf16.msra.mxu0 0
      %697 = vmatprep.subr.bf16.mxu0 0
      %698 = vmatpush1.bf16.msra.mxu0 0
      %699 = vmatprep.subr.bf16.mxu0 0
      %700 = vmatpush1.bf16.msra.mxu0 0
      %701 = vmatprep.mubr.bf16.mxu0 0
      %702 = vmatmul.mubr.bf16.gmra.mrb[0].mxu0 %v591
      %v703 = vpop.f32.mrb[0].mxu0
      %v704 = vadd.f32 %v619, %v703
      %v705 = vpop.f32.mrb[0].mxu0
      %v706 = vpop.f32.mrb[0].mxu0
      %v707 = vadd.f32 %v619, %v706
      %v708 = vpop.f32.mrb[0].mxu0
      %709 = vmatprep.mubr.bf16.mxu0 0
      %710 = vmatmul.mubr.bf16.gmra.mrb[0].mxu0 %v592
      %v711 = vpop.f32.mrb[0].mxu0
      %v712 = vadd.f32 %v619, %v711
      %v713 = vpop.f32.mrb[0].mxu0
      %v714 = vpop.f32.mrb[0].mxu0
      %v715 = vadd.f32 %v619, %v714
      %v716 = vpop.f32.mrb[0].mxu0
      %717 = vmatprep.mubr.bf16.mxu0 0
      %718 = vmatmul.mubr.bf16.gmra.mrb[0].mxu0 %v593
      %v719 = vpop.f32.mrb[0].mxu0
      %v720 = vadd.f32 %v619, %v719
      %v721 = vpop.f32.mrb[0].mxu0
      %v722 = vpop.f32.mrb[0].mxu0
      %v723 = vadd.f32 %v619, %v722
      %v724 = vpop.f32.mrb[0].mxu0
      %725 = vmatprep.mubr.bf16.mxu0 0
      %726 = vmatmul.mubr.bf16.gmra.mrb[0].mxu0 %v594
      %v727 = vpop.f32.mrb[0].mxu0
      %v728 = vadd.f32 %v619, %v727
      %v729 = vpop.f32.mrb[0].mxu0
      %v730 = vpop.f32.mrb[0].mxu0
      %v731 = vadd.f32 %v619, %v730
      %v732 = vpop.f32.mrb[0].mxu0
      %733 = vmatprep.mubr.bf16.mxu0 0
      %734 = vmatmul.mubr.bf16.gmra.mrb[0].mxu0 %v595
      %v735 = vpop.f32.mrb[0].mxu0
      %v736 = vadd.f32 %v619, %v735
      %v737 = vpop.f32.mrb[0].mxu0
      %v738 = vpop.f32.mrb[0].mxu0
      %v739 = vadd.f32 %v619, %v738
      %v740 = vpop.f32.mrb[0].mxu0
      %741 = vmatprep.mubr.bf16.mxu0 0
      %742 = vmatmul.mubr.bf16.gmra.mrb[0].mxu0 %v596
      %v743 = vpop.f32.mrb[0].mxu0
      %v744 = vadd.f32 %v619, %v743
      %v745 = vpop.f32.mrb[0].mxu0
      %v746 = vpop.f32.mrb[0].mxu0
      %v747 = vadd.f32 %v619, %v746
      %v748 = vpop.f32.mrb[0].mxu0
      %749 = vmatprep.mubr.bf16.mxu0 0
      %750 = vmatmul.mubr.bf16.gmra.mrb[0].mxu0 %v597
      %v751 = vpop.f32.mrb[0].mxu0
      %v752 = vadd.f32 %v619, %v751
      %v753 = vpop.f32.mrb[0].mxu0
      %v754 = vpop.f32.mrb[0].mxu0
      %v755 = vadd.f32 %v619, %v754
      %v756 = vpop.f32.mrb[0].mxu0
      %757 = vmatprep.mubr.bf16.mxu0 0
      %758 = vmatmul.mubr.bf16.gmra.mrb[0].mxu0 %v598
      %v759 = vpop.f32.mrb[0].mxu0
      %v760 = vadd.f32 %v619, %v759
      %v761 = vpop.f32.mrb[0].mxu0
      %v762 = vpop.f32.mrb[0].mxu0
      %v763 = vadd.f32 %v619, %v762
      %v764 = vpop.f32.mrb[0].mxu0
      %765 = vdwg.mxu0
      %766 = vmax.xlane.f32.xlu0 %v704
      %v767 = vpop.xlane.xlu0 %766
      %768 = vmax.xlane.f32.xlu0 %v707
      %v769 = vpop.xlane.xlu0 %768
      %770 = vmax.xlane.f32.xlu0 %v712
      %v771 = vpop.xlane.xlu0 %770
      %772 = vmax.xlane.f32.xlu0 %v715
      %v773 = vpop.xlane.xlu0 %772
      %774 = vmax.xlane.f32.xlu0 %v720
      %v775 = vpop.xlane.xlu0 %774
      %776 = vmax.xlane.f32.xlu0 %v723
      %v777 = vpop.xlane.xlu0 %776
      %778 = vmax.xlane.f32.xlu0 %v728
      %v779 = vpop.xlane.xlu0 %778
      %780 = vmax.xlane.f32.xlu0 %v731
      %v781 = vpop.xlane.xlu0 %780
      %782 = vmax.xlane.f32.xlu0 %v736
      %v783 = vpop.xlane.xlu0 %782
      %784 = vmax.xlane.f32.xlu0 %v739
      %v785 = vpop.xlane.xlu0 %784
      %786 = vmax.xlane.f32.xlu0 %v744
      %v787 = vpop.xlane.xlu0 %786
      %788 = vmax.xlane.f32.xlu0 %v747
      %v789 = vpop.xlane.xlu0 %788
      %790 = vmax.xlane.f32.xlu0 %v752
      %v791 = vpop.xlane.xlu0 %790
      %792 = vmax.xlane.f32.xlu0 %v755
      %v793 = vpop.xlane.xlu0 %792
      %794 = vmax.xlane.f32.xlu0 %v760
      %v795 = vpop.xlane.xlu0 %794
      %796 = vmax.xlane.f32.xlu0 %v763
      %v797 = vpop.xlane.xlu0 %796
      %v798 = vsub.f32 %v704, %v767
      %v799 = vsub.f32 %v707, %v769
      %v800 = vsub.f32 %v712, %v771
      %v801 = vsub.f32 %v715, %v773
      %v802 = vsub.f32 %v720, %v775
      %v803 = vsub.f32 %v723, %v777
      %v804 = vsub.f32 %v728, %v779
      %v805 = vsub.f32 %v731, %v781
      %v806 = vsub.f32 %v736, %v783
      %v807 = vsub.f32 %v739, %v785
      %v808 = vsub.f32 %v744, %v787
      %v809 = vsub.f32 %v747, %v789
      %v810 = vsub.f32 %v752, %v791
      %v811 = vsub.f32 %v755, %v793
      %v812 = vsub.f32 %v760, %v795
      %v813 = vsub.f32 %v763, %v797
      %v814 = vmul.f32 %v798, 1.442695
      %v815 = vpow.pop %v814
      %v816 = vmul.f32 %v799, 1.442695
      %v817 = vpow.pop %v816
      %v818 = vmul.f32 %v800, 1.442695
      %v819 = vpow.pop %v818
      %v820 = vmul.f32 %v801, 1.442695
      %v821 = vpow.pop %v820
      %v822 = vmul.f32 %v802, 1.442695
      %v823 = vpow.pop %v822
      %v824 = vmul.f32 %v803, 1.442695
      %v825 = vpow.pop %v824
      %v826 = vmul.f32 %v804, 1.442695
      %v827 = vpow.pop %v826
      %v828 = vmul.f32 %v805, 1.442695
      %v829 = vpow.pop %v828
      %v830 = vmul.f32 %v806, 1.442695
      %v831 = vpow.pop %v830
      %v832 = vmul.f32 %v807, 1.442695
      %v833 = vpow.pop %v832
      %v834 = vmul.f32 %v808, 1.442695
      %v835 = vpow.pop %v834
      %v836 = vmul.f32 %v809, 1.442695
      %v837 = vpow.pop %v836
      %v838 = vmul.f32 %v810, 1.442695
      %v839 = vpow.pop %v838
      %v840 = vmul.f32 %v811, 1.442695
      %v841 = vpow.pop %v840
      %v842 = vmul.f32 %v812, 1.442695
      %v843 = vpow.pop %v842
      %v844 = vmul.f32 %v813, 1.442695
      %v845 = vpow.pop %v844
      %846 = vadd.xlane.f32.xlu0 %v815
      %v847 = vpop.xlane.xlu0 %846
      %848 = vadd.xlane.f32.xlu0 %v817
      %v849 = vpop.xlane.xlu0 %848
      %850 = vadd.xlane.f32.xlu0 %v819
      %v851 = vpop.xlane.xlu0 %850
      %852 = vadd.xlane.f32.xlu0 %v821
      %v853 = vpop.xlane.xlu0 %852
      %854 = vadd.xlane.f32.xlu0 %v823
      %v855 = vpop.xlane.xlu0 %854
      %856 = vadd.xlane.f32.xlu0 %v825
      %v857 = vpop.xlane.xlu0 %856
      %858 = vadd.xlane.f32.xlu0 %v827
      %v859 = vpop.xlane.xlu0 %858
      %860 = vadd.xlane.f32.xlu0 %v829
      %v861 = vpop.xlane.xlu0 %860
      %862 = vadd.xlane.f32.xlu0 %v831
      %v863 = vpop.xlane.xlu0 %862
      %864 = vadd.xlane.f32.xlu0 %v833
      %v865 = vpop.xlane.xlu0 %864
      %866 = vadd.xlane.f32.xlu0 %v835
      %v867 = vpop.xlane.xlu0 %866
      %868 = vadd.xlane.f32.xlu0 %v837
      %v869 = vpop.xlane.xlu0 %868
      %870 = vadd.xlane.f32.xlu0 %v839
      %v871 = vpop.xlane.xlu0 %870
      %872 = vadd.xlane.f32.xlu0 %v841
      %v873 = vpop.xlane.xlu0 %872
      %874 = vadd.xlane.f32.xlu0 %v843
      %v875 = vpop.xlane.xlu0 %874
      %876 = vadd.xlane.f32.xlu0 %v845
      %v877 = vpop.xlane.xlu0 %876
      %v878 = vrcp.pop %v847
      %v879 = vrcp.pop %v849
      %v880 = vrcp.pop %v851
      %v881 = vrcp.pop %v853
      %v882 = vrcp.pop %v855
      %v883 = vrcp.pop %v857
      %v884 = vrcp.pop %v859
      %v885 = vrcp.pop %v861
      %v886 = vrcp.pop %v863
      %v887 = vrcp.pop %v865
      %v888 = vrcp.pop %v867
      %v889 = vrcp.pop %v869
      %v890 = vrcp.pop %v871
      %v891 = vrcp.pop %v873
      %v892 = vrcp.pop %v875
      %v893 = vrcp.pop %v877
      %v894 = vmul.f32 %v815, %v878
      %v895 = vmul.f32 %v817, %v879
      %v896 = vmul.f32 %v819, %v880
      %v897 = vmul.f32 %v821, %v881
      %v898 = vmul.f32 %v823, %v882
      %v899 = vmul.f32 %v825, %v883
      %v900 = vmul.f32 %v827, %v884
      %v901 = vmul.f32 %v829, %v885
      %v902 = vmul.f32 %v831, %v886
      %v903 = vmul.f32 %v833, %v887
      %v904 = vmul.f32 %v835, %v888
      %v905 = vmul.f32 %v837, %v889
      %v906 = vmul.f32 %v839, %v890
      %v907 = vmul.f32 %v841, %v891
      %v908 = vmul.f32 %v843, %v892
      %v909 = vmul.f32 %v845, %v893
      %vm910 = vcmask 130048
      %911 = vst.msk [vmem:[%s226] sm:$0xff] %vm910, %v894
      %912 = vst.msk [vmem:[%s226 + $0x8] sm:$0xff] %vm910, %v895
      %913 = vst.msk [vmem:[%s226 + $0x10] sm:$0xff] %vm910, %v896
      %914 = vst.msk [vmem:[%s226 + $0x18] sm:$0xff] %vm910, %v897
      %915 = vst.msk [vmem:[%s226 + $0x20] sm:$0xff] %vm910, %v898
      %916 = vst.msk [vmem:[%s226 + $0x28] sm:$0xff] %vm910, %v899
      %917 = vst.msk [vmem:[%s226 + $0x30] sm:$0xff] %vm910, %v900
      %918 = vst.msk [vmem:[%s226 + $0x38] sm:$0xff] %vm910, %v901
      %919 = vst.msk [vmem:[%s226 + $0x40] sm:$0xff] %vm910, %v902
      %920 = vst.msk [vmem:[%s226 + $0x48] sm:$0xff] %vm910, %v903
      %921 = vst.msk [vmem:[%s226 + $0x50] sm:$0xff] %vm910, %v904
      %922 = vst.msk [vmem:[%s226 + $0x58] sm:$0xff] %vm910, %v905
      %923 = vst.msk [vmem:[%s226 + $0x60] sm:$0xff] %vm910, %v906
      %924 = vst.msk [vmem:[%s226 + $0x68] sm:$0xff] %vm910, %v907
      %925 = vst.msk [vmem:[%s226 + $0x70] sm:$0xff] %vm910, %v908
      %926 = vst.msk [vmem:[%s226 + $0x78] sm:$0xff] %vm910, %v909
      %s927 = smul.u32 16, %s16
      %p928 = scmp.lt.s32.totalorder %s927, 31
      %s929 = scalar_select %p928, %s927, 31
      %s930 = smul.addr %s929, 8
      %s931 = scalar_lea.vmem %s5, %s930
      // Predicated region
      $region41: #{tpu_custom_call.1} parent=39 // pred_check
        %p932 = pneg %p144
      $region42: #{tpu_custom_call.1} parent=39 // pred_check_branch
        %934 = sbr.rel (%p932) target = $region44
      $region43: #{tpu_custom_call.1} parent=39 // pred_region
        %s935 = smul.u32 16, %s16
      $region44: #{tpu_custom_call.1} parent=39 // pred_fallthru
        _
    $region40: #{tpu_custom_call.1} parent=5 // pred_fallthru
      _
    %p936 = scmp.le.s32.totalorder 2, %s11
    // Predicated region
    $region45: #{tpu_custom_call.1} parent=5 // pred_check
      %p937 = pneg %p936
    $region46: #{tpu_custom_call.1} parent=5 // pred_check_branch
      %939 = sbr.rel (%p937) target = $region48
    $region47: #{tpu_custom_call.1} parent=5 // pred_region
      %s940 = ssub.s32 %s11, 2
      // Predicated region
      $region49: #{tpu_custom_call.1} parent=47 // pred_check
        %p941 = pneg %p150
      $region50: #{tpu_custom_call.1} parent=47 // pred_check_branch
        %943 = sbr.rel (%p941) target = $region52
      $region51: #{tpu_custom_call.1} parent=47 // pred_region
        %s944 = smul.u32 16, %s17
        %p945 = scmp.lt.s32.totalorder %s944, 31
        %s946 = scalar_select %p945, %s944, 31
        %s947 = smul.addr %s946, 8
        %s948 = scalar_lea.vmem %s5, %s947
      $region52: #{tpu_custom_call.1} parent=47 // pred_fallthru
        _
    $region48: #{tpu_custom_call.1} parent=5 // pred_fallthru
      _
  $region6: #{tpu_custom_call.1} parent=0 // loop_footer
    %s15 = sadd.s32 1, %s11
  $region7: #{tpu_custom_call.1} parent=0 // loop_footer_branch
    %10 = sbr.rel target = $region3
  $region8: #{tpu_custom_call.1} parent=0 // loop_exit
    _

</llo_original>
